<compile_context>
chip_gen: v6e
topology: v6e:2x2x1
jax: 0.10.0
libtpu: 0.0.40
codegen_flags: <defaults>
</compile_context>

<pallas_src>
import functools

import jax
import jax.numpy as jnp
from jax.experimental import pallas as pl
from jax.experimental.pallas import tpu as pltpu


def _choose_tile_t(T, C, K, vmem_budget_bytes=8 * 1024 * 1024):
    """Largest T-tile (multiple of 128, <=512) fitting a double-buffered budget."""
    # per-token f32 bytes: z in (C) + d out (K) + q out (C), double-buffered.
    per_token = 4 * (2 * C + K) * 2
    resident = 4 * K * (C + 1)              # codebook + ||e||^2 stay resident
    max_tile = max(128, (vmem_budget_bytes - resident) // max(per_token, 1))
    tile = min(T, 512, max_tile)
    if tile >= T:
        return T                            # full-extent block is always legal
    return max(128, (tile // 128) * 128)    # lane-dense stores


def _make_vq_kernel(K, C, tile_t, t_true, needs_mask):
    """Kernel for one (batch, T-tile) block of one EMA codebook."""

    def kernel(z_ref, e_ref, e2_ref, d_ref, q_ref, cnt_ref):
        # z_ref: (C, TILE_T) tokens (T on lanes), e_ref: (K, C) codebook,
        # e2_ref: (K, 1) precomputed ||e||^2.
        z = z_ref[...]
        e = e_ref[...]

        zf = z.astype(jnp.float32)
        z2 = jnp.sum(zf * zf, axis=0, keepdims=True)            # (1, TILE_T)

        # -2 z.e^T term on the MXU in the native dtype, f32 accumulate.
        ez = jax.lax.dot_general(
            e, z, (((1,), (0,)), ((), ())),
            preferred_element_type=jnp.float32)                 # (K, TILE_T)

        d = z2 - 2.0 * ez + e2_ref[...]                         # (K, TILE_T)
        d_ref[...] = d

        # nearest code index (first index on ties, matching torch.argmin)
        iota_k = jax.lax.broadcasted_iota(jnp.int32, (K, tile_t), 0)
        min_d = jnp.min(d, axis=0, keepdims=True)               # (1, TILE_T)
        idx = jnp.min(jnp.where(d == min_d, iota_k, K), axis=0, keepdims=True)
        onehot = (iota_k == idx).astype(e.dtype)                # (K, TILE_T)

        # gather quantised vectors: e^T @ onehot on the MXU -> (C, TILE_T)
        q = jax.lax.dot_general(
            e, onehot, (((0,), (0,)), ((), ())),
            preferred_element_type=jnp.float32)
        q_ref[...] = q.astype(q_ref.dtype)

        # per-tile code-usage counts (padded tokens masked out)
        oh = onehot.astype(jnp.float32)
        if needs_mask:
            t0 = pl.program_id(1) * tile_t
            iota_t = jax.lax.broadcasted_iota(jnp.int32, (K, tile_t), 1)
            oh = jnp.where(t0 + iota_t < t_true, oh, 0.0)
        cnt_ref[...] = jnp.sum(oh, axis=1, keepdims=True)       # (K, 1)

    return kernel


@functools.partial(jax.jit, static_argnames=("tile_t",))
def ema_codebook_quantise(z_bct, codebook, tile_t=None):
    """Quantise one stream.  z_bct: [B, C, T], codebook: [K, C]."""
    B, C, T = z_bct.shape
    K = codebook.shape[0]

    if tile_t is None:
        tile_t = _choose_tile_t(T, C, K)
    n_t = pl.cdiv(T, tile_t)
    t_pad = n_t * tile_t
    needs_mask = t_pad != T

    z_in = z_bct
    if needs_mask:
        z_in = jnp.pad(z_bct, ((0, 0), (0, 0), (0, t_pad - T)))

    # hoisted ||e||^2 (computed once, not per tile)
    e2 = jnp.sum(codebook.astype(jnp.float32) ** 2, axis=-1, keepdims=True)

    kernel = _make_vq_kernel(K, C, tile_t, T, needs_mask)

    d_pad, q_pad, counts = pl.pallas_call(
        kernel,
        grid=(B, n_t),
        out_shape=(
            jax.ShapeDtypeStruct((B, K, t_pad), jnp.float32),    # distances
            jax.ShapeDtypeStruct((B, C, t_pad), z_bct.dtype),    # quantised
            jax.ShapeDtypeStruct((B, n_t, K, 1), jnp.float32),   # per-tile counts
        ),
        in_specs=[
            pl.BlockSpec((None, C, tile_t), lambda b, t: (b, 0, t)),
            pl.BlockSpec((K, C), lambda b, t: (0, 0)),
            pl.BlockSpec((K, 1), lambda b, t: (0, 0)),
        ],
        out_specs=(
            pl.BlockSpec((None, K, tile_t), lambda b, t: (b, 0, t)),
            pl.BlockSpec((None, C, tile_t), lambda b, t: (b, 0, t)),
            pl.BlockSpec((None, None, K, 1), lambda b, t: (b, t, 0, 0)),
        ),
        compiler_params=pltpu.CompilerParams(
            dimension_semantics=("parallel", "parallel"),
            vmem_limit_bytes=48 * 1024 * 1024,
        ),
    )(z_in, codebook, e2)

    d_bkt = d_pad[:, :, :T] if needs_mask else d_pad
    q_bct = q_pad[:, :, :T] if needs_mask else q_pad

    code_counts = jnp.sum(counts, axis=(0, 1, 3))                # (K,)
    avg_probs = code_counts / float(B * T)
    perplexity = jnp.exp(-jnp.sum(avg_probs * jnp.log(avg_probs + 1e-10)))

    # straight-through estimator (numerically zq == q in the forward pass)
    zq_bct = z_bct + jax.lax.stop_gradient(q_bct - z_bct)
    return zq_bct, q_bct, d_bkt, perplexity


class UNetQuantiserEMAPallas:
    """Forward-pass-only port of UNetQuantiserEMA (EMA buffers untouched)."""

    def __init__(self, codebooks):
        # codebooks: list of [K_i, C_i] embedding matrices
        self.codebooks = codebooks
        # TODO(synk): update_reservoir / initialise_codebook_from_reservoir /
        # EMA-momentum updates are training-time state mutation, not forward
        # compute, and are not implemented here.
        # TODO(synk): codebooks with identical (K, C) could be stacked into a
        # single lane-filling pallas_call; kept per-codebook here because the
        # configured codebooks have heterogeneous shapes.

    def __call__(self, list_z_bct):
        list_zq, list_q, list_d, list_p_dev = [], [], [], []
        for z_bct, cb in zip(list_z_bct, self.codebooks):
            zq, q, d, p = ema_codebook_quantise(z_bct, cb)
            list_zq.append(zq)
            list_q.append(q)
            list_d.append(d)
            list_p_dev.append(p)
        # single deferred device->host sync after all streams are dispatched
        # (matches `.item()` in the torch module without serialising launches)
        list_p = [float(p) for p in jax.device_get(list_p_dev)]
        return list_zq, list_q, list_d, list_p


def _reference_quantise(z_bct, codebook):
    """Plain-JAX reference for a correctness spot-check."""
    B, C, T = z_bct.shape
    K = codebook.shape[0]
    z = jnp.transpose(z_bct, (0, 2, 1)).reshape(B * T, C).astype(jnp.float32)
    cb = codebook.astype(jnp.float32)
    d = (jnp.sum(z * z, -1, keepdims=True)
         - 2.0 * z @ cb.T
         + jnp.sum(cb * cb, -1)[None, :])
    idx = jnp.argmin(d, axis=-1)
    q = cb[idx]
    onehot = jax.nn.one_hot(idx, K, dtype=jnp.float32)
    avg = onehot.mean(0)
    perp = jnp.exp(-jnp.sum(avg * jnp.log(avg + 1e-10)))
    d_bkt = jnp.transpose(d.reshape(B, T, K), (0, 2, 1))
    q_bct = jnp.transpose(q.reshape(B, T, C), (0, 2, 1)).astype(z_bct.dtype)
    return q_bct, d_bkt, perp


if __name__ == "__main__":
    key = jax.random.PRNGKey(0)
    k_cb0, k_cb1, k_z0, k_z1, k_z2, k_cb2 = jax.random.split(key, 6)

    # two quantisers: (K=64 codes, C=32 dim) and (K=32 codes, C=16 dim)
    codebooks = [
        jax.random.normal(k_cb0, (64, 32), dtype=jnp.float32),
        jax.random.normal(k_cb1, (32, 16), dtype=jnp.float32),
    ]
    # inputs in BCT layout: B=2, T=16
    list_z_bct = [
        jax.random.normal(k_z0, (2, 32, 16), dtype=jnp.float32),
        jax.random.normal(k_z1, (2, 16, 16), dtype=jnp.float32),
    ]

    module = UNetQuantiserEMAPallas(codebooks)
    list_zq, list_q, list_d, list_perplexity = module(list_z_bct)
    for arr in list_zq + list_q + list_d:
        jax.block_until_ready(arr)

    # spot-check against a plain-JAX reference
    for z, cb, q, d, zq, p in zip(list_z_bct, codebooks, list_q, list_d,
                                  list_zq, list_perplexity):
        q_ref, d_ref, p_ref = _reference_quantise(z, cb)
        assert jnp.allclose(q, q_ref, rtol=1e-3, atol=1e-3)
        assert jnp.allclose(d, d_ref, rtol=1e-3, atol=1e-3)
        assert jnp.allclose(zq, q, rtol=1e-4, atol=1e-4)
        assert abs(p - float(p_ref)) < 1e-3
        assert q.shape == z.shape
        assert d.shape == (z.shape[0], cb.shape[0], z.shape[2])
    assert all(isinstance(p, float) for p in list_perplexity)

    # extra check: multi-tile + masked-padding path (T=160 forced to TILE_T=128)
    cb2 = jax.random.normal(k_cb2, (64, 16), dtype=jnp.float32)
    z2 = jax.random.normal(k_z2, (2, 16, 160), dtype=jnp.float32)
    zq2, q2, d2, p2 = ema_codebook_quantise(z2, cb2, tile_t=128)
    jax.block_until_ready(q2)
    q2_ref, d2_ref, p2_ref = _reference_quantise(z2, cb2)
    assert jnp.allclose(q2, q2_ref, rtol=1e-3, atol=1e-3)
    assert jnp.allclose(d2, d2_ref, rtol=1e-3, atol=1e-3)
    assert abs(float(p2) - float(p2_ref)) < 1e-3

    print("KERNEL_OK")
</pallas_src>

<mosaic_0001>
module attributes {stable_mosaic.version = 11 : i64} {
  func.func @kernel(%arg0: i32, %arg1: i32, %arg2: memref<1x32x16xf32, #tpu.memory_space<vmem>>, %arg3: memref<64x32xf32, #tpu.memory_space<vmem>>, %arg4: memref<64x1xf32, #tpu.memory_space<vmem>>, %arg5: memref<1x64x16xf32, #tpu.memory_space<vmem>>, %arg6: memref<1x32x16xf32, #tpu.memory_space<vmem>>, %arg7: memref<1x1x64x1xf32, #tpu.memory_space<vmem>>) attributes {dimension_semantics = [#tpu.dimension_semantics<parallel>, #tpu.dimension_semantics<parallel>], iteration_bounds = array<i64: 2, 1>, scalar_prefetch = 0 : i64, scratch_operands = 0 : i64, tpu.core_type = #tpu.core_type<tc>, window_params = [{transform_indices = @transform_0, window_bounds = array<i64: 1, 32, 16>}, {pipeline_mode = #tpu.pipeline_mode<synchronous>, transform_indices = @transform_1, window_bounds = array<i64: 64, 32>}, {pipeline_mode = #tpu.pipeline_mode<synchronous>, transform_indices = @transform_2, window_bounds = array<i64: 64, 1>}, {transform_indices = @transform_3, window_bounds = array<i64: 1, 64, 16>}, {transform_indices = @transform_4, window_bounds = array<i64: 1, 32, 16>}, {transform_indices = @transform_5, window_bounds = array<i64: 1, 1, 64, 1>}]} {
    %c0 = arith.constant 0 : index
    %c0_0 = arith.constant 0 : index
    %c0_1 = arith.constant 0 : index
    %0 = vector.load %arg2[%c0, %c0_0, %c0_1] : memref<1x32x16xf32, #tpu.memory_space<vmem>>, vector<1x32x16xf32>
    %1 = vector.shape_cast %0 : vector<1x32x16xf32> to vector<32x16xf32>
    %c0_2 = arith.constant 0 : index
    %c0_3 = arith.constant 0 : index
    %2 = vector.load %arg3[%c0_2, %c0_3] : memref<64x32xf32, #tpu.memory_space<vmem>>, vector<64x32xf32>
    %3 = arith.mulf %1, %1 : vector<32x16xf32>
    %cst = arith.constant dense<0.000000e+00> : vector<16xf32>
    %4 = vector.multi_reduction <add>, %3, %cst [0] : vector<32x16xf32> to vector<16xf32>
    %5 = vector.shape_cast %4 : vector<16xf32> to vector<1x16xf32>
    %cst_4 = arith.constant dense<0.000000e+00> : vector<64x16xf32>
    %6 = tpu.matmul %2, %1, %cst_4 {dimension_numbers = #tpu.dot_dimension_numbers<[1], [0], [0], [1], [0, 0, 1, 1], [], []>} : vector<64x32xf32>, vector<32x16xf32>, vector<64x16xf32> -> vector<64x16xf32>
    %cst_5 = arith.constant 2.000000e+00 : f32
    %7 = vector.broadcast %cst_5 : f32 to vector<64x16xf32>
    %8 = arith.mulf %7, %6 : vector<64x16xf32>
    %9 = vector.broadcast %5 : vector<1x16xf32> to vector<64x16xf32>
    %10 = arith.subf %9, %8 : vector<64x16xf32>
    %c0_6 = arith.constant 0 : index
    %c0_7 = arith.constant 0 : index
    %11 = vector.load %arg4[%c0_6, %c0_7] : memref<64x1xf32, #tpu.memory_space<vmem>>, vector<64x1xf32>
    %12 = vector.broadcast %11 : vector<64x1xf32> to vector<64x16xf32>
    %13 = arith.addf %10, %12 : vector<64x16xf32>
    %c0_8 = arith.constant 0 : index
    %c0_9 = arith.constant 0 : index
    %c0_10 = arith.constant 0 : index
    %14 = vector.load %arg5[%c0_8, %c0_9, %c0_10] : memref<1x64x16xf32, #tpu.memory_space<vmem>>, vector<1x64x16xf32>
    %15 = vector.shape_cast %14 : vector<1x64x16xf32> to vector<64x16xf32>
    %16 = vector.shape_cast %13 : vector<64x16xf32> to vector<1x64x16xf32>
    tpu.vector_store %arg5[%c0_8, %c0_9, %c0_10], %16 {strides = array<i32>} : memref<1x64x16xf32, #tpu.memory_space<vmem>>, vector<1x64x16xf32>,
    %17 = tpu.iota {dimensions = array<i32: 0>} : vector<64x16xi32>
    %cst_11 = arith.constant dense<0x7F800000> : vector<16xf32>
    %18 = vector.multi_reduction <minimumf>, %13, %cst_11 [0] : vector<64x16xf32> to vector<16xf32>
    %19 = vector.shape_cast %18 : vector<16xf32> to vector<1x16xf32>
    %20 = vector.broadcast %19 : vector<1x16xf32> to vector<64x16xf32>
    %21 = arith.cmpf oeq, %13, %20 : vector<64x16xf32>
    %c64_i32 = arith.constant 64 : i32
    %22 = vector.broadcast %c64_i32 : i32 to vector<64x16xi32>
    %23 = arith.select %21, %17, %22 : vector<64x16xi1>, vector<64x16xi32>
    %cst_12 = arith.constant dense<2147483647> : vector<16xi32>
    %24 = vector.multi_reduction <minsi>, %23, %cst_12 [0] : vector<64x16xi32> to vector<16xi32>
    %25 = vector.shape_cast %24 : vector<16xi32> to vector<1x16xi32>
    %26 = vector.broadcast %25 : vector<1x16xi32> to vector<64x16xi32>
    %27 = arith.cmpi eq, %17, %26 : vector<64x16xi32>
    %28 = arith.extui %27 : vector<64x16xi1> to vector<64x16xi32>
    %29 = arith.sitofp %28 : vector<64x16xi32> to vector<64x16xf32>
    %cst_13 = arith.constant dense<0.000000e+00> : vector<32x16xf32>
    %30 = tpu.matmul %2, %29, %cst_13 {dimension_numbers = #tpu.dot_dimension_numbers<[0], [0], [1], [1], [0, 1, 1, 1], [], []>} : vector<64x32xf32>, vector<64x16xf32>, vector<32x16xf32> -> vector<32x16xf32>
    %c0_14 = arith.constant 0 : index
    %c0_15 = arith.constant 0 : index
    %c0_16 = arith.constant 0 : index
    %31 = vector.load %arg6[%c0_14, %c0_15, %c0_16] : memref<1x32x16xf32, #tpu.memory_space<vmem>>, vector<1x32x16xf32>
    %32 = vector.shape_cast %31 : vector<1x32x16xf32> to vector<32x16xf32>
    %33 = vector.shape_cast %30 : vector<32x16xf32> to vector<1x32x16xf32>
    tpu.vector_store %arg6[%c0_14, %c0_15, %c0_16], %33 {strides = array<i32>} : memref<1x32x16xf32, #tpu.memory_space<vmem>>, vector<1x32x16xf32>,
    %cst_17 = arith.constant dense<0.000000e+00> : vector<64xf32>
    %34 = vector.multi_reduction <add>, %29, %cst_17 [1] : vector<64x16xf32> to vector<64xf32>
    %35 = vector.shape_cast %34 : vector<64xf32> to vector<64x1xf32>
    %c0_18 = arith.constant 0 : index
    %c0_19 = arith.constant 0 : index
    %c0_20 = arith.constant 0 : index
    %c0_21 = arith.constant 0 : index
    %36 = vector.load %arg7[%c0_18, %c0_19, %c0_20, %c0_21] : memref<1x1x64x1xf32, #tpu.memory_space<vmem>>, vector<1x1x64x1xf32>
    %37 = vector.shape_cast %36 : vector<1x1x64x1xf32> to vector<64x1xf32>
    %38 = vector.shape_cast %35 : vector<64x1xf32> to vector<1x1x64x1xf32>
    tpu.vector_store %arg7[%c0_18, %c0_19, %c0_20, %c0_21], %38 {strides = array<i32>} : memref<1x1x64x1xf32, #tpu.memory_space<vmem>>, vector<1x1x64x1xf32>,
    return
  }
  func.func @transform_0(%arg0: i32, %arg1: i32) -> (i32, i32, i32) {
    %c0_i32 = arith.constant 0 : i32
    %c0_i32_0 = arith.constant 0 : i32
    return %arg0, %c0_i32, %arg1 : i32, i32, i32
  }
  func.func @transform_1(%arg0: i32, %arg1: i32) -> (i32, i32) {
    %c0_i32 = arith.constant 0 : i32
    %c0_i32_0 = arith.constant 0 : i32
    %c0_i32_1 = arith.constant 0 : i32
    return %c0_i32, %c0_i32_0 : i32, i32
  }
  func.func @transform_2(%arg0: i32, %arg1: i32) -> (i32, i32) {
    %c0_i32 = arith.constant 0 : i32
    %c0_i32_0 = arith.constant 0 : i32
    %c0_i32_1 = arith.constant 0 : i32
    return %c0_i32, %c0_i32_0 : i32, i32
  }
  func.func @transform_3(%arg0: i32, %arg1: i32) -> (i32, i32, i32) {
    %c0_i32 = arith.constant 0 : i32
    %c0_i32_0 = arith.constant 0 : i32
    return %arg0, %c0_i32, %arg1 : i32, i32, i32
  }
  func.func @transform_4(%arg0: i32, %arg1: i32) -> (i32, i32, i32) {
    %c0_i32 = arith.constant 0 : i32
    %c0_i32_0 = arith.constant 0 : i32
    return %arg0, %c0_i32, %arg1 : i32, i32, i32
  }
  func.func @transform_5(%arg0: i32, %arg1: i32) -> (i32, i32, i32, i32) {
    %c0_i32 = arith.constant 0 : i32
    %c0_i32_0 = arith.constant 0 : i32
    %c0_i32_1 = arith.constant 0 : i32
    return %arg0, %arg1, %c0_i32, %c0_i32_0 : i32, i32, i32, i32
  }
}

</mosaic_0001>

<llo_original>
// kernel: ema_codebook_quantise.1
$region0: #{ema_codebook_quantise.1}
  #allocation0 [shape = 'u32[]', space=smem, size = 0x4, offset = 0x4, fixed_abs, tag = 'smem constant byte address 0x4 - core index']
  #allocation1 [shape = 'u32[144,128]{1,0:T(1,128)}', space=vmem, size = 0x12000, scoped, tag = 'internal scratch']
  %s0 = inlined_call_operand.vmem [shape: f32[2,32,16], index: 0, kind: input, shape index: {}]
  %s1 = inlined_call_operand.vmem [shape: f32[64,32], index: 1, kind: input, shape index: {}]
  %s2 = inlined_call_operand.vmem [shape: f32[64,1], index: 2, kind: input, shape index: {}]
  %s3 = inlined_call_operand.vmem [shape: f32[2,64,16], index: 3, kind: output, shape index: {0}]
  %s4 = inlined_call_operand.vmem [shape: f32[2,32,16], index: 4, kind: output, shape index: {1}]
  %s5 = inlined_call_operand.vmem [shape: f32[2,1,64,1], index: 5, kind: output, shape index: {2}]
  %6 = xla_tuple %s3, %s4, %s5
  %s7 = sld [smem:[#allocation0]]
  $region61: #{ema_codebook_quantise.1} parent=0
    _
  %s9 = ssub.s32 1, %s7
  %s10 = scalar_select 0, %s9, %s7
  loop: start=0, step=1, limit=4
  $region2: #{ema_codebook_quantise.1} parent=0 // loop_pre_header
    _
  $region3: #{ema_codebook_quantise.1} parent=0 // loop_header
    %s12 = sphi 0, %s16
    %p13 = scmp.ge.s32.totalorder %s12, 4
    %s19 = sphi 0, %s31
    %s20 = sphi 0, %s27
    %s21 = sphi 0, %s19
    %s22 = sphi 0, %s20
    %s23 = sphi 0, %s21
    %s24 = sphi 0, %s22
    %s36 = sphi 0, %s38
    %s39 = sphi 0, %s36
    %s40 = sphi 0, %s39
    %s56 = sphi 0, %s40
    %s60 = sphi 0, %s60
    %s62 = sphi 0, %s60
    %s63 = sphi 0, %s62
    %s77 = sphi 0, %s63
    %s81 = sphi 0, %s81
    %s83 = sphi 0, %s81
    %s84 = sphi 0, %s83
    %s98 = sphi 0, %s84
    %s106 = sphi 0, %s108
    %s109 = sphi 0, %s106
    %s110 = sphi 0, %s109
    %s126 = sphi 0, %s110
    %s134 = sphi 0, %s136
    %s137 = sphi 0, %s134
    %s138 = sphi 0, %s137
    %s154 = sphi 0, %s138
    %s162 = sphi 0, %s164
    %s165 = sphi 0, %s162
    %s166 = sphi 0, %s165
    %s182 = sphi 0, %s166
  $region4: #{ema_codebook_quantise.1} parent=0 // loop_header_branch
    %15 = sbr.rel (%p13) target = $region8
  $region5: #{ema_codebook_quantise.1} parent=0 // loop_body
    %s17 = ssub.s32 %s12, 1
    %s18 = ssub.s32 %s12, 2
    %s25 = sadd.s32 1, %s20
    %p26 = scmp.ge.s32.totalorder %s25, 1
    %s27 = scalar_select %p26, 0, %s25
    %s28 = sadd.s32 1, %s19
    %s29 = scalar_select %p26, %s28, %s19
    %p30 = scmp.ge.s32.totalorder %s29, 2
    %s31 = scalar_select %p30, 0, %s29
    %s32 = ssub.s32 %s19, %s31
    %s33 = ssub.s32 %s20, %s27
    %s34 = sor.u32 %s32, %s33
    %p35 = scmp.eq.s32.totalorder %s34, 0
    %s37 = sadd.s32 %s36, 1
    %s38 = scalar_select %p35, %s36, %s37
    %p41 = pneg %p35
    %p42 = scmp.eq.s32.totalorder %s12, 1
    %p43 = por %p41, %p42
    %p44 = scmp.ne.s32.totalorder %s36, %s39
    %p45 = scmp.eq.s32.totalorder %s12, 0
    %p46 = por %p44, %p45
    %p47 = scmp.ne.s32.totalorder %s36, %s39
    %p48 = scmp.eq.s32.totalorder %s17, 1
    %p49 = por %p47, %p48
    %p50 = scmp.ne.s32.totalorder %s39, %s40
    %p51 = scmp.eq.s32.totalorder %s17, 0
    %p52 = por %p50, %p51
    %p53 = scmp.ne.s32.totalorder %s39, %s40
    %p54 = scmp.eq.s32.totalorder %s18, 1
    %p55 = por %p53, %p54
    %p57 = scmp.ne.s32.totalorder %s40, %s56
    %p58 = scmp.eq.s32.totalorder %s18, 0
    %p59 = por %p57, %p58
    %s61 = sadd.s32 %s60, 1
    %p64 = scmp.eq.s32.totalorder %s12, 1
    %p65 = scmp.ne.s32.totalorder %s60, %s62
    %p66 = scmp.eq.s32.totalorder %s12, 0
    %p67 = por %p65, %p66
    %p68 = scmp.ne.s32.totalorder %s60, %s62
    %p69 = scmp.eq.s32.totalorder %s17, 1
    %p70 = por %p68, %p69
    %p71 = scmp.ne.s32.totalorder %s62, %s63
    %p72 = scmp.eq.s32.totalorder %s17, 0
    %p73 = por %p71, %p72
    %p74 = scmp.ne.s32.totalorder %s62, %s63
    %p75 = scmp.eq.s32.totalorder %s18, 1
    %p76 = por %p74, %p75
    %p78 = scmp.ne.s32.totalorder %s63, %s77
    %p79 = scmp.eq.s32.totalorder %s18, 0
    %p80 = por %p78, %p79
    %s82 = sadd.s32 %s81, 1
    %p85 = scmp.eq.s32.totalorder %s12, 1
    %p86 = scmp.ne.s32.totalorder %s81, %s83
    %p87 = scmp.eq.s32.totalorder %s12, 0
    %p88 = por %p86, %p87
    %p89 = scmp.ne.s32.totalorder %s81, %s83
    %p90 = scmp.eq.s32.totalorder %s17, 1
    %p91 = por %p89, %p90
    %p92 = scmp.ne.s32.totalorder %s83, %s84
    %p93 = scmp.eq.s32.totalorder %s17, 0
    %p94 = por %p92, %p93
    %p95 = scmp.ne.s32.totalorder %s83, %s84
    %p96 = scmp.eq.s32.totalorder %s18, 1
    %p97 = por %p95, %p96
    %p99 = scmp.ne.s32.totalorder %s84, %s98
    %p100 = scmp.eq.s32.totalorder %s18, 0
    %p101 = por %p99, %p100
    %s102 = ssub.s32 %s19, %s31
    %s103 = ssub.s32 %s20, %s27
    %s104 = sor.u32 %s102, %s103
    %p105 = scmp.eq.s32.totalorder %s104, 0
    %s107 = sadd.s32 %s106, 1
    %s108 = scalar_select %p105, %s106, %s107
    %p111 = pneg %p105
    %p112 = scmp.eq.s32.totalorder %s12, 1
    %p113 = por %p111, %p112
    %p114 = scmp.ne.s32.totalorder %s106, %s109
    %p115 = scmp.eq.s32.totalorder %s12, 0
    %p116 = por %p114, %p115
    %p117 = scmp.ne.s32.totalorder %s106, %s109
    %p118 = scmp.eq.s32.totalorder %s17, 1
    %p119 = por %p117, %p118
    %p120 = scmp.ne.s32.totalorder %s109, %s110
    %p121 = scmp.eq.s32.totalorder %s17, 0
    %p122 = por %p120, %p121
    %p123 = scmp.ne.s32.totalorder %s109, %s110
    %p124 = scmp.eq.s32.totalorder %s18, 1
    %p125 = por %p123, %p124
    %p127 = scmp.ne.s32.totalorder %s110, %s126
    %p128 = scmp.eq.s32.totalorder %s18, 0
    %p129 = por %p127, %p128
    %s130 = ssub.s32 %s19, %s31
    %s131 = ssub.s32 %s20, %s27
    %s132 = sor.u32 %s130, %s131
    %p133 = scmp.eq.s32.totalorder %s132, 0
    %s135 = sadd.s32 %s134, 1
    %s136 = scalar_select %p133, %s134, %s135
    %p139 = pneg %p133
    %p140 = scmp.eq.s32.totalorder %s12, 1
    %p141 = por %p139, %p140
    %p142 = scmp.ne.s32.totalorder %s134, %s137
    %p143 = scmp.eq.s32.totalorder %s12, 0
    %p144 = por %p142, %p143
    %p145 = scmp.ne.s32.totalorder %s134, %s137
    %p146 = scmp.eq.s32.totalorder %s17, 1
    %p147 = por %p145, %p146
    %p148 = scmp.ne.s32.totalorder %s137, %s138
    %p149 = scmp.eq.s32.totalorder %s17, 0
    %p150 = por %p148, %p149
    %p151 = scmp.ne.s32.totalorder %s137, %s138
    %p152 = scmp.eq.s32.totalorder %s18, 1
    %p153 = por %p151, %p152
    %p155 = scmp.ne.s32.totalorder %s138, %s154
    %p156 = scmp.eq.s32.totalorder %s18, 0
    %p157 = por %p155, %p156
    %s158 = ssub.s32 %s19, %s31
    %s159 = ssub.s32 %s20, %s27
    %s160 = sor.u32 %s158, %s159
    %p161 = scmp.eq.s32.totalorder %s160, 0
    %s163 = sadd.s32 %s162, 1
    %s164 = scalar_select %p161, %s162, %s163
    %p167 = pneg %p161
    %p168 = scmp.eq.s32.totalorder %s12, 1
    %p169 = por %p167, %p168
    %p170 = scmp.ne.s32.totalorder %s162, %s165
    %p171 = scmp.eq.s32.totalorder %s12, 0
    %p172 = por %p170, %p171
    %p173 = scmp.ne.s32.totalorder %s162, %s165
    %p174 = scmp.eq.s32.totalorder %s17, 1
    %p175 = por %p173, %p174
    %p176 = scmp.ne.s32.totalorder %s165, %s166
    %p177 = scmp.eq.s32.totalorder %s17, 0
    %p178 = por %p176, %p177
    %p179 = scmp.ne.s32.totalorder %s165, %s166
    %p180 = scmp.eq.s32.totalorder %s18, 1
    %p181 = por %p179, %p180
    %p183 = scmp.ne.s32.totalorder %s166, %s182
    %p184 = scmp.eq.s32.totalorder %s18, 0
    %p185 = por %p183, %p184
    %p186 = scmp.le.s32.totalorder 1, %s12
    %p187 = scmp.lt.s32.totalorder %s12, 3
    %p188 = pnand %p186, %p187
    %p189 = pneg %p188
    // Predicated region
    $region9: #{ema_codebook_quantise.1} parent=5 // pred_check
      _
    $region10: #{ema_codebook_quantise.1} parent=5 // pred_check_branch
      %191 = sbr.rel (%p188) target = $region12
    $region11: #{ema_codebook_quantise.1} parent=5 // pred_region
      %s192 = ssub.s32 %s12, 1
      // Predicated region
      $region13: #{ema_codebook_quantise.1} parent=11 // pred_check
        %p193 = pneg %p73
      $region14: #{ema_codebook_quantise.1} parent=11 // pred_check_branch
        %195 = sbr.rel (%p193) target = $region16
      $region15: #{ema_codebook_quantise.1} parent=11 // pred_region
        _
      $region16: #{ema_codebook_quantise.1} parent=11 // pred_fallthru
        _
      // Predicated region
      $region17: #{ema_codebook_quantise.1} parent=11 // pred_check
        %p196 = pneg %p94
      $region18: #{ema_codebook_quantise.1} parent=11 // pred_check_branch
        %198 = sbr.rel (%p196) target = $region20
      $region19: #{ema_codebook_quantise.1} parent=11 // pred_region
        _
      $region20: #{ema_codebook_quantise.1} parent=11 // pred_fallthru
        _
    $region12: #{ema_codebook_quantise.1} parent=5 // pred_fallthru
      _
    %p199 = scmp.lt.s32.totalorder %s12, 2
    // Predicated region
    $region21: #{ema_codebook_quantise.1} parent=5 // pred_check
      %p200 = pneg %p199
    $region22: #{ema_codebook_quantise.1} parent=5 // pred_check_branch
      %202 = sbr.rel (%p200) target = $region24
    $region23: #{ema_codebook_quantise.1} parent=5 // pred_region
      // Predicated region
      $region25: #{ema_codebook_quantise.1} parent=23 // pred_check
        %p203 = pneg %p46
      $region26: #{ema_codebook_quantise.1} parent=23 // pred_check_branch
        %205 = sbr.rel (%p203) target = $region28
      $region27: #{ema_codebook_quantise.1} parent=23 // pred_region
        %p206 = scmp.lt.s32.totalorder %s19, 1
        %s207 = scalar_select %p206, %s19, 1
        %p208 = scmp.lt.s32.totalorder %s20, 0
        %s209 = scalar_select %p208, %s20, 0
        %s210 = smul.addr %s207, 4
        %s211 = sadd.s32 %s209, %s210
        %s212 = smul.addr %s211, 8
        %s213 = scalar_lea.vmem %s0, %s212
      $region28: #{ema_codebook_quantise.1} parent=23 // pred_fallthru
        _
    $region24: #{ema_codebook_quantise.1} parent=5 // pred_fallthru
      _
    %p214 = scmp.le.s32.totalorder 1, %s12
    %p215 = scmp.lt.s32.totalorder %s12, 3
    %p216 = pnand %p214, %p215
    %p217 = pneg %p216
    // Predicated region
    $region29: #{ema_codebook_quantise.1} parent=5 // pred_check
      _
    $region30: #{ema_codebook_quantise.1} parent=5 // pred_check_branch
      %219 = sbr.rel (%p216) target = $region32
    $region31: #{ema_codebook_quantise.1} parent=5 // pred_region
      %s220 = ssub.s32 %s12, 1
      %p221 = scmp.lt.s32.totalorder %s21, 1
      %s222 = scalar_select %p221, %s21, 1
      %p223 = scmp.lt.s32.totalorder %s22, 0
      %s224 = scalar_select %p223, %s22, 0
      %s225 = smul.addr %s222, 4
      %s226 = sadd.s32 %s224, %s225
      %s227 = smul.addr %s226, 8
      %s228 = scalar_lea.vmem %s0, %s227
      %p229 = pneg %p52
      %p230 = pneg %p49
      %p231 = pneg %p73
      %p232 = pneg %p70
      %p233 = pneg %p94
      %p234 = pneg %p91
      %p235 = pneg %p122
      %p236 = pneg %p119
      %p237 = scmp.lt.s32.totalorder %s21, 1
      %s238 = scalar_select %p237, %s21, 1
      %p239 = scmp.lt.s32.totalorder %s22, 0
      %s240 = scalar_select %p239, %s22, 0
      %s241 = smul.addr %s238, 8
      %s242 = sadd.s32 %s240, %s241
      %s243 = smul.addr %s242, 8
      %s244 = scalar_lea.vmem %s3, %s243
      %p245 = pneg %p150
      %p246 = pneg %p147
      %p247 = scmp.lt.s32.totalorder %s21, 1
      %s248 = scalar_select %p247, %s21, 1
      %p249 = scmp.lt.s32.totalorder %s22, 0
      %s250 = scalar_select %p249, %s22, 0
      %s251 = smul.addr %s248, 4
      %s252 = sadd.s32 %s250, %s251
      %s253 = smul.addr %s252, 8
      %s254 = scalar_lea.vmem %s4, %s253
      %p255 = pneg %p178
      %p256 = pneg %p175
      %p257 = scmp.lt.s32.totalorder %s21, 1
      %s258 = scalar_select %p257, %s21, 1
      %p259 = scmp.lt.s32.totalorder %s22, 0
      %s260 = scalar_select %p259, %s22, 0
      %s261 = smul.addr %s260, 8
      %s262 = smul.addr %s258, 8
      %s263 = sadd.s32 %s261, %s262
      %s264 = smul.addr %s263, 8
      %s265 = scalar_lea.vmem %s5, %s264
      %p266 = scmp.lt.s32.totalorder %s21, 1
      %s267 = scalar_select %p266, %s21, 1
      %p268 = scmp.lt.s32.totalorder %s22, 0
      %s269 = scalar_select %p268, %s22, 0
      %s270 = smul.addr %s267, 4
      %s271 = sadd.s32 %s269, %s270
      %s272 = smul.addr %s271, 8
      %s273 = scalar_lea.vmem %s0, %s272
      %p274 = scmp.lt.s32.totalorder %s21, 1
      %s275 = scalar_select %p274, %s21, 1
      %p276 = scmp.lt.s32.totalorder %s22, 0
      %s277 = scalar_select %p276, %s22, 0
      %s278 = smul.addr %s275, 8
      %s279 = sadd.s32 %s277, %s278
      %s280 = smul.addr %s279, 8
      %s281 = scalar_lea.vmem %s3, %s280
      %p282 = scmp.lt.s32.totalorder %s21, 1
      %s283 = scalar_select %p282, %s21, 1
      %p284 = scmp.lt.s32.totalorder %s22, 0
      %s285 = scalar_select %p284, %s22, 0
      %s286 = smul.addr %s283, 4
      %s287 = sadd.s32 %s285, %s286
      %s288 = smul.addr %s287, 8
      %s289 = scalar_lea.vmem %s4, %s288
      %p290 = scmp.lt.s32.totalorder %s21, 1
      %s291 = scalar_select %p290, %s21, 1
      %p292 = scmp.lt.s32.totalorder %s22, 0
      %s293 = scalar_select %p292, %s22, 0
      %s294 = smul.addr %s293, 8
      %s295 = smul.addr %s291, 8
      %s296 = sadd.s32 %s294, %s295
      %s297 = smul.addr %s296, 8
      %s298 = scalar_lea.vmem %s5, %s297
      %v299 = vld [vmem:[%s273] sm:$0xff]
      %v300 = vld [vmem:[%s273 + $0x8] sm:$0xff]
      %v301 = vld [vmem:[%s273 + $0x10] sm:$0xff]
      %v302 = vld [vmem:[%s273 + $0x18] sm:$0xff]
      %v303 = vld [vmem:[%s1] sm:$0xff]
      %v304 = vld [vmem:[%s1 + $0x8] sm:$0xff]
      %v305 = vld [vmem:[%s1 + $0x10] sm:$0xff]
      %v306 = vld [vmem:[%s1 + $0x18] sm:$0xff]
      %v307 = vld [vmem:[%s1 + $0x20] sm:$0xff]
      %v308 = vld [vmem:[%s1 + $0x28] sm:$0xff]
      %v309 = vld [vmem:[%s1 + $0x30] sm:$0xff]
      %v310 = vld [vmem:[%s1 + $0x38] sm:$0xff]
      %v311 = vmul.f32 %v299, %v299
      %v312 = vmul.f32 %v300, %v300
      %v313 = vmul.f32 %v301, %v301
      %v314 = vmul.f32 %v302, %v302
      %vm315 = vcmask 130048
      %v316 = vsel %vm315, %v311, 0.0
      %v317 = vsel %vm315, %v312, 0.0
      %v318 = vadd.f32 %v316, %v317
      %v319 = vsel %vm315, %v313, 0.0
      %v320 = vadd.f32 %v318, %v319
      %v321 = vsel %vm315, %v314, 0.0
      %v322 = vadd.f32 %v320, %v321
      %v323 = vrot.slane %v322, 4
      %v324 = vadd.f32 %v322, %v323
      %v325 = vrot.slane %v324, 2
      %v326 = vadd.f32 %v324, %v325
      %v327 = vrot.slane %v326, 1
      %v328 = vadd.f32 %v326, %v327
      %vm329 = vcmask 261120
      %v331 = vsel %vm329, %v303, 0
      %v334 = vsel %vm329, %v304, 0
      %v337 = vsel %vm329, %v305, 0
      %v340 = vsel %vm329, %v306, 0
      %v343 = vsel %vm329, %v307, 0
      %v346 = vsel %vm329, %v308, 0
      %v349 = vsel %vm329, %v309, 0
      %v352 = vsel %vm329, %v310, 0
      %354 = vmatprep.subr.mxu0 0.0
      %355 = vmatpush1.msra.mxu0 0.0
      %356 = vmatprep.subr.mxu0 0.0
      %357 = vmatpush1.msra.mxu0 0.0
      %358 = vmatprep.subr.mxu0 0.0
      %359 = vmatpush1.msra.mxu0 0.0
      %360 = vmatprep.subr.mxu0 0.0
      %361 = vmatpush1.msra.mxu0 0.0
      %362 = vmatprep.subr.mxu0 0.0
      %363 = vmatpush1.msra.mxu0 0.0
      %364 = vmatprep.subr.mxu0 0.0
      %365 = vmatpush1.msra.mxu0 0.0
      %366 = vmatprep.subr.mxu0 0.0
      %367 = vmatpush1.msra.mxu0 0.0
      %368 = vmatprep.subr.mxu0 0.0
      %369 = vmatpush1.msra.mxu0 0.0
      %370 = vmatprep.subr.mxu0 0.0
      %371 = vmatpush1.msra.mxu0 0.0
      %372 = vmatprep.subr.mxu0 0.0
      %373 = vmatpush1.msra.mxu0 0.0
      %374 = vmatprep.subr.mxu0 0.0
      %375 = vmatpush1.msra.mxu0 0.0
      %376 = vmatprep.subr.mxu0 0.0
      %377 = vmatpush1.msra.mxu0 0.0
      %378 = vmatprep.subr.mxu0 0.0
      %379 = vmatpush1.msra.mxu0 %v302
      %380 = vmatprep.subr.mxu0 0.0
      %381 = vmatpush1.msra.mxu0 %v301
      %382 = vmatprep.subr.mxu0 0.0
      %383 = vmatpush1.msra.mxu0 %v300
      %384 = vmatprep.subr.mxu0 0.0
      %385 = vmatpush1.msra.mxu0 %v299
      %386 = vmatprep.subr.mxu0 0.0
      %387 = vmatpush2.msra.mxu0 0.0
      %388 = vmatprep.subr.mxu0 0.0
      %389 = vmatpush2.msra.mxu0 0.0
      %390 = vmatprep.subr.mxu0 0.0
      %391 = vmatpush2.msra.mxu0 0.0
      %392 = vmatprep.subr.mxu0 0.0
      %393 = vmatpush2.msra.mxu0 0.0
      %394 = vmatprep.subr.mxu0 0.0
      %395 = vmatpush2.msra.mxu0 0.0
      %396 = vmatprep.subr.mxu0 0.0
      %397 = vmatpush2.msra.mxu0 0.0
      %398 = vmatprep.subr.mxu0 0.0
      %399 = vmatpush2.msra.mxu0 0.0
      %400 = vmatprep.subr.mxu0 0.0
      %401 = vmatpush2.msra.mxu0 0.0
      %402 = vmatprep.subr.mxu0 0.0
      %403 = vmatpush2.msra.mxu0 0.0
      %404 = vmatprep.subr.mxu0 0.0
      %405 = vmatpush2.msra.mxu0 0.0
      %406 = vmatprep.subr.mxu0 0.0
      %407 = vmatpush2.msra.mxu0 0.0
      %408 = vmatprep.subr.mxu0 0.0
      %409 = vmatpush2.msra.mxu0 0.0
      %410 = vmatprep.subr.mxu0 0.0
      %411 = vmatpush2.msra.mxu0 0.0
      %412 = vmatprep.subr.mxu0 0.0
      %413 = vmatpush2.msra.mxu0 0.0
      %414 = vmatprep.subr.mxu0 0.0
      %415 = vmatpush2.msra.mxu0 0.0
      %416 = vmatprep.subr.mxu0 0.0
      %417 = vmatpush2.msra.mxu0 0.0
      %418 = vmatprep.mubr.f32.mxu0 0.0
      %419 = vmatmul.mubr.f32.gmra.mxu0 %v331
      %v420 = vpop.f32.mrf.mxu0
      %v421 = vadd.f32 0.0, %v420
      %v422 = vpop.f32.mrf.mxu0
      %423 = vmatprep.mubr.f32.mxu0 0.0
      %424 = vmatmul.mubr.f32.gmra.mxu0 %v334
      %v425 = vpop.f32.mrf.mxu0
      %v426 = vadd.f32 0.0, %v425
      %v427 = vpop.f32.mrf.mxu0
      %428 = vmatprep.mubr.f32.mxu0 0.0
      %429 = vmatmul.mubr.f32.gmra.mxu0 %v337
      %v430 = vpop.f32.mrf.mxu0
      %v431 = vadd.f32 0.0, %v430
      %v432 = vpop.f32.mrf.mxu0
      %433 = vmatprep.mubr.f32.mxu0 0.0
      %434 = vmatmul.mubr.f32.gmra.mxu0 %v340
      %v435 = vpop.f32.mrf.mxu0
      %v436 = vadd.f32 0.0, %v435
      %v437 = vpop.f32.mrf.mxu0
      %438 = vmatprep.mubr.f32.mxu0 0.0
      %439 = vmatmul.mubr.f32.gmra.mxu0 %v343
      %v440 = vpop.f32.mrf.mxu0
      %v441 = vadd.f32 0.0, %v440
      %v442 = vpop.f32.mrf.mxu0
      %443 = vmatprep.mubr.f32.mxu0 0.0
      %444 = vmatmul.mubr.f32.gmra.mxu0 %v346
      %v445 = vpop.f32.mrf.mxu0
      %v446 = vadd.f32 0.0, %v445
      %v447 = vpop.f32.mrf.mxu0
      %448 = vmatprep.mubr.f32.mxu0 0.0
      %449 = vmatmul.mubr.f32.gmra.mxu0 %v349
      %v450 = vpop.f32.mrf.mxu0
      %v451 = vadd.f32 0.0, %v450
      %v452 = vpop.f32.mrf.mxu0
      %453 = vmatprep.mubr.f32.mxu0 0.0
      %454 = vmatmul.mubr.f32.gmra.mxu0 %v352
      %v455 = vpop.f32.mrf.mxu0
      %v456 = vadd.f32 0.0, %v455
      %v457 = vpop.f32.mrf.mxu0
      %458 = vdwg.mxu0
      %v459 = vmul.f32 %v421, 2.0
      %v460 = vmul.f32 %v426, 2.0
      %v461 = vmul.f32 %v431, 2.0
      %v462 = vmul.f32 %v436, 2.0
      %v463 = vmul.f32 %v441, 2.0
      %v464 = vmul.f32 %v446, 2.0
      %v465 = vmul.f32 %v451, 2.0
      %v466 = vmul.f32 %v456, 2.0
      %v467 = vsub.f32 %v328, %v459
      %v468 = vsub.f32 %v328, %v460
      %v469 = vsub.f32 %v328, %v461
      %v470 = vsub.f32 %v328, %v462
      %v471 = vsub.f32 %v328, %v463
      %v472 = vsub.f32 %v328, %v464
      %v473 = vsub.f32 %v328, %v465
      %v474 = vsub.f32 %v328, %v466
      %v475 = vld [vmem:[%s2] sm:$0xff]
      %v476 = vld [vmem:[%s2 + $0x8] sm:$0xff]
      %v477 = vld [vmem:[%s2 + $0x10] sm:$0xff]
      %v478 = vld [vmem:[%s2 + $0x18] sm:$0xff]
      %v479 = vld [vmem:[%s2 + $0x20] sm:$0xff]
      %v480 = vld [vmem:[%s2 + $0x28] sm:$0xff]
      %v481 = vld [vmem:[%s2 + $0x30] sm:$0xff]
      %v482 = vld [vmem:[%s2 + $0x38] sm:$0xff]
      %484 = vset.pattern.permute.xlu0 0
      %485 = vperm.xlu0 %484, %v475
      %v486 = vpop.permute.xlu0 %485
      %489 = vset.pattern.permute.xlu0 0
      %490 = vperm.xlu0 %489, %v476
      %v491 = vpop.permute.xlu0 %490
      %494 = vset.pattern.permute.xlu0 0
      %495 = vperm.xlu0 %494, %v477
      %v496 = vpop.permute.xlu0 %495
      %499 = vset.pattern.permute.xlu0 0
      %500 = vperm.xlu0 %499, %v478
      %v501 = vpop.permute.xlu0 %500
      %504 = vset.pattern.permute.xlu0 0
      %505 = vperm.xlu0 %504, %v479
      %v506 = vpop.permute.xlu0 %505
      %509 = vset.pattern.permute.xlu0 0
      %510 = vperm.xlu0 %509, %v480
      %v511 = vpop.permute.xlu0 %510
      %514 = vset.pattern.permute.xlu0 0
      %515 = vperm.xlu0 %514, %v481
      %v516 = vpop.permute.xlu0 %515
      %519 = vset.pattern.permute.xlu0 0
      %520 = vperm.xlu0 %519, %v482
      %v521 = vpop.permute.xlu0 %520
      %v523 = vadd.f32 %v467, %v486
      %v524 = vadd.f32 %v468, %v491
      %v525 = vadd.f32 %v469, %v496
      %v526 = vadd.f32 %v470, %v501
      %v527 = vadd.f32 %v471, %v506
      %v528 = vadd.f32 %v472, %v511
      %v529 = vadd.f32 %v473, %v516
      %v530 = vadd.f32 %v474, %v521
      %531 = vst.msk [vmem:[%s281] sm:$0xff] %vm315, %v523
      %532 = vst.msk [vmem:[%s281 + $0x8] sm:$0xff] %vm315, %v524
      %533 = vst.msk [vmem:[%s281 + $0x10] sm:$0xff] %vm315, %v525
      %534 = vst.msk [vmem:[%s281 + $0x18] sm:$0xff] %vm315, %v526
      %535 = vst.msk [vmem:[%s281 + $0x20] sm:$0xff] %vm315, %v527
      %536 = vst.msk [vmem:[%s281 + $0x28] sm:$0xff] %vm315, %v528
      %537 = vst.msk [vmem:[%s281 + $0x30] sm:$0xff] %vm315, %v529
      %538 = vst.msk [vmem:[%s281 + $0x38] sm:$0xff] %vm315, %v530
      %v539 = vlaneseq
      %v540 = vshrl.u32 %v539, 7
      %v541 = vadd.s32 %v540, 8
      %v542 = vadd.s32 %v540, 16
      %v543 = vadd.s32 %v540, 24
      %v544 = vadd.s32 %v540, 32
      %v545 = vadd.s32 %v540, 40
      %v546 = vadd.s32 %v540, 48
      %v547 = vadd.s32 %v540, 56
      %v548 = vsel %vm315, %v523, inf
      %v549 = vsel %vm315, %v524, inf
      %v550 = vsel %vm315, %v525, inf
      %v551 = vsel %vm315, %v526, inf
      %v552 = vsel %vm315, %v527, inf
      %v553 = vmin.f32 %v548, %v552
      %v554 = vsel %vm315, %v528, inf
      %v555 = vmin.f32 %v549, %v554
      %v556 = vsel %vm315, %v529, inf
      %v557 = vmin.f32 %v550, %v556
      %v558 = vsel %vm315, %v530, inf
      %v559 = vmin.f32 %v551, %v558
      %v560 = vmin.f32 %v553, %v555
      %v561 = vmin.f32 %v557, %v559
      %v562 = vmin.f32 %v560, %v561
      %v563 = vrot.slane %v562, 4
      %v564 = vmin.f32 %v562, %v563
      %v565 = vrot.slane %v564, 2
      %v566 = vmin.f32 %v564, %v565
      %v567 = vrot.slane %v566, 1
      %v568 = vmin.f32 %v566, %v567
      %vm569 = vcmp.eq.f32.partialorder %v523, %v568
      %vm570 = vcmp.eq.f32.partialorder %v524, %v568
      %vm571 = vcmp.eq.f32.partialorder %v525, %v568
      %vm572 = vcmp.eq.f32.partialorder %v526, %v568
      %vm573 = vcmp.eq.f32.partialorder %v527, %v568
      %vm574 = vcmp.eq.f32.partialorder %v528, %v568
      %vm575 = vcmp.eq.f32.partialorder %v529, %v568
      %vm576 = vcmp.eq.f32.partialorder %v530, %v568
      %v577 = vsel %vm569, %v540, 64
      %v578 = vsel %vm570, %v541, 64
      %v579 = vsel %vm571, %v542, 64
      %v580 = vsel %vm572, %v543, 64
      %v581 = vsel %vm573, %v544, 64
      %v582 = vsel %vm574, %v545, 64
      %v583 = vsel %vm575, %v546, 64
      %v584 = vsel %vm576, %v547, 64
      %v585 = vsel %vm315, %v577, 2147483647
      %v586 = vsel %vm315, %v578, 2147483647
      %v587 = vsel %vm315, %v579, 2147483647
      %v588 = vsel %vm315, %v580, 2147483647
      %v589 = vsel %vm315, %v581, 2147483647
      %vm590 = vcmp.lt.s32.totalorder %v585, %v589
      %v591 = vsel %vm590, %v585, %v589
      %v592 = vsel %vm315, %v582, 2147483647
      %vm593 = vcmp.lt.s32.totalorder %v586, %v592
      %v594 = vsel %vm593, %v586, %v592
      %v595 = vsel %vm315, %v583, 2147483647
      %vm596 = vcmp.lt.s32.totalorder %v587, %v595
      %v597 = vsel %vm596, %v587, %v595
      %v598 = vsel %vm315, %v584, 2147483647
      %vm599 = vcmp.lt.s32.totalorder %v588, %v598
      %v600 = vsel %vm599, %v588, %v598
      %vm601 = vcmp.lt.s32.totalorder %v591, %v594
      %v602 = vsel %vm601, %v591, %v594
      %vm603 = vcmp.lt.s32.totalorder %v597, %v600
      %v604 = vsel %vm603, %v597, %v600
      %vm605 = vcmp.lt.s32.totalorder %v602, %v604
      %v606 = vsel %vm605, %v602, %v604
      %v607 = vrot.slane %v606, 4
      %vm608 = vcmp.lt.s32.totalorder %v606, %v607
      %v609 = vsel %vm608, %v606, %v607
      %v610 = vrot.slane %v609, 2
      %vm611 = vcmp.lt.s32.totalorder %v609, %v610
      %v612 = vsel %vm611, %v609, %v610
      %v613 = vrot.slane %v612, 1
      %vm614 = vcmp.lt.s32.totalorder %v612, %v613
      %v615 = vsel %vm614, %v612, %v613
      %vm616 = vcmp.eq.s32.totalorder %v540, %v615
      %vm617 = vcmp.eq.s32.totalorder %v541, %v615
      %vm618 = vcmp.eq.s32.totalorder %v542, %v615
      %vm619 = vcmp.eq.s32.totalorder %v543, %v615
      %vm620 = vcmp.eq.s32.totalorder %v544, %v615
      %vm621 = vcmp.eq.s32.totalorder %v545, %v615
      %vm622 = vcmp.eq.s32.totalorder %v546, %v615
      %vm623 = vcmp.eq.s32.totalorder %v547, %v615
      %v624 = vsel %vm616, 1, 0
      %v625 = vsel %vm617, 1, 0
      %v626 = vsel %vm618, 1, 0
      %v627 = vsel %vm619, 1, 0
      %v628 = vsel %vm620, 1, 0
      %v629 = vsel %vm621, 1, 0
      %v630 = vsel %vm622, 1, 0
      %v631 = vsel %vm623, 1, 0
      %v632 = vcvt.s32.f32 %v624
      %v633 = vcvt.s32.f32 %v625
      %v634 = vcvt.s32.f32 %v626
      %v635 = vcvt.s32.f32 %v627
      %v636 = vcvt.s32.f32 %v628
      %v637 = vcvt.s32.f32 %v629
      %v638 = vcvt.s32.f32 %v630
      %v639 = vcvt.s32.f32 %v631
      %640 = vxpose.xlu0.b32.start [1/16] %v303, 128
      %641 = vxpose.xlu0.b32.cont [2/16] %v304, 128
      %642 = vxpose.xlu0.b32.cont [3/16] %v305, 128
      %643 = vxpose.xlu0.b32.cont [4/16] %v306, 128
      %644 = vxpose.xlu0.b32.cont [5/16] %v307, 128
      %645 = vxpose.xlu0.b32.cont [6/16] %v308, 128
      %646 = vxpose.xlu0.b32.cont [7/16] %v309, 128
      %647 = vxpose.xlu0.b32.cont [8/16] %v310, 128
      %648 = vxpose.xlu0.b32.cont [9/16] 0.0, 128
      %649 = vxpose.xlu0.b32.cont [10/16] 0.0, 128
      %650 = vxpose.xlu0.b32.cont [11/16] 0.0, 128
      %651 = vxpose.xlu0.b32.cont [12/16] 0.0, 128
      %652 = vxpose.xlu0.b32.cont [13/16] 0.0, 128
      %653 = vxpose.xlu0.b32.cont [14/16] 0.0, 128
      %654 = vxpose.xlu0.b32.cont [15/16] 0.0, 128
      %655 = vxpose.xlu0.b32.end [16/16] 0.0, 128
      %v656 = vpop.trf.xlu0
      %v657 = vpop.trf.xlu0
      %v658 = vpop.trf.xlu0
      %v659 = vpop.trf.xlu0
      %v660 = vpop.trf.xlu0
      %v661 = vpop.trf.xlu0
      %v662 = vpop.trf.xlu0
      %v663 = vpop.trf.xlu0
      %v664 = vpop.trf.xlu0
      %v665 = vpop.trf.xlu0
      %v666 = vpop.trf.xlu0
      %v667 = vpop.trf.xlu0
      %v668 = vpop.trf.xlu0
      %v669 = vpop.trf.xlu0
      %v670 = vpop.trf.xlu0
      %v671 = vpop.trf.xlu0
      %vm672 = vcmask 523264
      %v674 = vsel %vm672, %v656, 0
      %v677 = vsel %vm672, %v657, 0
      %v680 = vsel %vm672, %v658, 0
      %v683 = vsel %vm672, %v659, 0
      %685 = vmatprep.subr.mxu0 0.0
      %686 = vmatpush1.msra.mxu0 0.0
      %687 = vmatprep.subr.mxu0 0.0
      %688 = vmatpush1.msra.mxu0 0.0
      %689 = vmatprep.subr.mxu0 0.0
      %690 = vmatpush1.msra.mxu0 0.0
      %691 = vmatprep.subr.mxu0 0.0
      %692 = vmatpush1.msra.mxu0 0.0
      %693 = vmatprep.subr.mxu0 0.0
      %694 = vmatpush1.msra.mxu0 0.0
      %695 = vmatprep.subr.mxu0 0.0
      %696 = vmatpush1.msra.mxu0 0.0
      %697 = vmatprep.subr.mxu0 0.0
      %698 = vmatpush1.msra.mxu0 0.0
      %699 = vmatprep.subr.mxu0 0.0
      %700 = vmatpush1.msra.mxu0 0.0
      %701 = vmatprep.subr.mxu0 0.0
      %702 = vmatpush1.msra.mxu0 %v639
      %703 = vmatprep.subr.mxu0 0.0
      %704 = vmatpush1.msra.mxu0 %v638
      %705 = vmatprep.subr.mxu0 0.0
      %706 = vmatpush1.msra.mxu0 %v637
      %707 = vmatprep.subr.mxu0 0.0
      %708 = vmatpush1.msra.mxu0 %v636
      %709 = vmatprep.subr.mxu0 0.0
      %710 = vmatpush1.msra.mxu0 %v635
      %711 = vmatprep.subr.mxu0 0.0
      %712 = vmatpush1.msra.mxu0 %v634
      %713 = vmatprep.subr.mxu0 0.0
      %714 = vmatpush1.msra.mxu0 %v633
      %715 = vmatprep.subr.mxu0 0.0
      %716 = vmatpush1.msra.mxu0 %v632
      %717 = vmatprep.subr.mxu0 0.0
      %718 = vmatpush2.msra.mxu0 0.0
      %719 = vmatprep.subr.mxu0 0.0
      %720 = vmatpush2.msra.mxu0 0.0
      %721 = vmatprep.subr.mxu0 0.0
      %722 = vmatpush2.msra.mxu0 0.0
      %723 = vmatprep.subr.mxu0 0.0
      %724 = vmatpush2.msra.mxu0 0.0
      %725 = vmatprep.subr.mxu0 0.0
      %726 = vmatpush2.msra.mxu0 0.0
      %727 = vmatprep.subr.mxu0 0.0
      %728 = vmatpush2.msra.mxu0 0.0
      %729 = vmatprep.subr.mxu0 0.0
      %730 = vmatpush2.msra.mxu0 0.0
      %731 = vmatprep.subr.mxu0 0.0
      %732 = vmatpush2.msra.mxu0 0.0
      %733 = vmatprep.subr.mxu0 0.0
      %734 = vmatpush2.msra.mxu0 0.0
      %735 = vmatprep.subr.mxu0 0.0
      %736 = vmatpush2.msra.mxu0 0.0
      %737 = vmatprep.subr.mxu0 0.0
      %738 = vmatpush2.msra.mxu0 0.0
      %739 = vmatprep.subr.mxu0 0.0
      %740 = vmatpush2.msra.mxu0 0.0
      %741 = vmatprep.subr.mxu0 0.0
      %742 = vmatpush2.msra.mxu0 0.0
      %743 = vmatprep.subr.mxu0 0.0
      %744 = vmatpush2.msra.mxu0 0.0
      %745 = vmatprep.subr.mxu0 0.0
      %746 = vmatpush2.msra.mxu0 0.0
      %747 = vmatprep.subr.mxu0 0.0
      %748 = vmatpush2.msra.mxu0 0.0
      %749 = vmatprep.mubr.f32.mxu0 0.0
      %750 = vmatmul.mubr.f32.gmra.mxu0 %v674
      %v751 = vpop.f32.mrf.mxu0
      %v752 = vadd.f32 0.0, %v751
      %v753 = vpop.f32.mrf.mxu0
      %754 = vmatprep.mubr.f32.mxu0 0.0
      %755 = vmatmul.mubr.f32.gmra.mxu0 %v677
      %v756 = vpop.f32.mrf.mxu0
      %v757 = vadd.f32 0.0, %v756
      %v758 = vpop.f32.mrf.mxu0
      %759 = vmatprep.mubr.f32.mxu0 0.0
      %760 = vmatmul.mubr.f32.gmra.mxu0 %v680
      %v761 = vpop.f32.mrf.mxu0
      %v762 = vadd.f32 0.0, %v761
      %v763 = vpop.f32.mrf.mxu0
      %764 = vmatprep.mubr.f32.mxu0 0.0
      %765 = vmatmul.mubr.f32.gmra.mxu0 %v683
      %v766 = vpop.f32.mrf.mxu0
      %v767 = vadd.f32 0.0, %v766
      %v768 = vpop.f32.mrf.mxu0
      %769 = vdwg.mxu0
      %770 = vst.msk [vmem:[%s289] sm:$0xff] %vm315, %v752
      %771 = vst.msk [vmem:[%s289 + $0x8] sm:$0xff] %vm315, %v757
      %772 = vst.msk [vmem:[%s289 + $0x10] sm:$0xff] %vm315, %v762
      %773 = vst.msk [vmem:[%s289 + $0x18] sm:$0xff] %vm315, %v767
      %v774 = vsel %vm315, %v632, 0.0
      %775 = vadd.xlane.f32.xlu0 %v774
      %v776 = vpop.xlane.xlu0 %775
      %v777 = vsel %vm315, %v633, 0.0
      %778 = vadd.xlane.f32.xlu0 %v777
      %v779 = vpop.xlane.xlu0 %778
      %v780 = vsel %vm315, %v634, 0.0
      %781 = vadd.xlane.f32.xlu0 %v780
      %v782 = vpop.xlane.xlu0 %781
      %v783 = vsel %vm315, %v635, 0.0
      %784 = vadd.xlane.f32.xlu0 %v783
      %v785 = vpop.xlane.xlu0 %784
      %v786 = vsel %vm315, %v636, 0.0
      %787 = vadd.xlane.f32.xlu0 %v786
      %v788 = vpop.xlane.xlu0 %787
      %v789 = vsel %vm315, %v637, 0.0
      %790 = vadd.xlane.f32.xlu0 %v789
      %v791 = vpop.xlane.xlu0 %790
      %v792 = vsel %vm315, %v638, 0.0
      %793 = vadd.xlane.f32.xlu0 %v792
      %v794 = vpop.xlane.xlu0 %793
      %v795 = vsel %vm315, %v639, 0.0
      %796 = vadd.xlane.f32.xlu0 %v795
      %v797 = vpop.xlane.xlu0 %796
      %vm798 = vcmask 7168
      %799 = vst.msk [vmem:[%s298] sm:$0xff] %vm798, %v776
      %800 = vst.msk [vmem:[%s298 + $0x8] sm:$0xff] %vm798, %v779
      %801 = vst.msk [vmem:[%s298 + $0x10] sm:$0xff] %vm798, %v782
      %802 = vst.msk [vmem:[%s298 + $0x18] sm:$0xff] %vm798, %v785
      %803 = vst.msk [vmem:[%s298 + $0x20] sm:$0xff] %vm798, %v788
      %804 = vst.msk [vmem:[%s298 + $0x28] sm:$0xff] %vm798, %v791
      %805 = vst.msk [vmem:[%s298 + $0x30] sm:$0xff] %vm798, %v794
      %806 = vst.msk [vmem:[%s298 + $0x38] sm:$0xff] %vm798, %v797
      %p807 = scmp.lt.s32.totalorder %s21, 1
      %s808 = scalar_select %p807, %s21, 1
      %p809 = scmp.lt.s32.totalorder %s22, 0
      %s810 = scalar_select %p809, %s22, 0
      %s811 = smul.addr %s808, 8
      %s812 = sadd.s32 %s810, %s811
      %s813 = smul.addr %s812, 8
      %s814 = scalar_lea.vmem %s3, %s813
      %p815 = scmp.lt.s32.totalorder %s21, 1
      %s816 = scalar_select %p815, %s21, 1
      %p817 = scmp.lt.s32.totalorder %s22, 0
      %s818 = scalar_select %p817, %s22, 0
      %s819 = smul.addr %s816, 4
      %s820 = sadd.s32 %s818, %s819
      %s821 = smul.addr %s820, 8
      %s822 = scalar_lea.vmem %s4, %s821
      %p823 = scmp.lt.s32.totalorder %s21, 1
      %s824 = scalar_select %p823, %s21, 1
      %p825 = scmp.lt.s32.totalorder %s22, 0
      %s826 = scalar_select %p825, %s22, 0
      %s827 = smul.addr %s826, 8
      %s828 = smul.addr %s824, 8
      %s829 = sadd.s32 %s827, %s828
      %s830 = smul.addr %s829, 8
      %s831 = scalar_lea.vmem %s5, %s830
      // Predicated region
      $region33: #{ema_codebook_quantise.1} parent=31 // pred_check
        %p832 = pneg %p119
      $region34: #{ema_codebook_quantise.1} parent=31 // pred_check_branch
        %834 = sbr.rel (%p832) target = $region36
      $region35: #{ema_codebook_quantise.1} parent=31 // pred_region
        _
      $region36: #{ema_codebook_quantise.1} parent=31 // pred_fallthru
        _
      // Predicated region
      $region37: #{ema_codebook_quantise.1} parent=31 // pred_check
        %p835 = pneg %p147
      $region38: #{ema_codebook_quantise.1} parent=31 // pred_check_branch
        %837 = sbr.rel (%p835) target = $region40
      $region39: #{ema_codebook_quantise.1} parent=31 // pred_region
        _
      $region40: #{ema_codebook_quantise.1} parent=31 // pred_fallthru
        _
      // Predicated region
      $region41: #{ema_codebook_quantise.1} parent=31 // pred_check
        %p838 = pneg %p175
      $region42: #{ema_codebook_quantise.1} parent=31 // pred_check_branch
        %840 = sbr.rel (%p838) target = $region44
      $region43: #{ema_codebook_quantise.1} parent=31 // pred_region
        _
      $region44: #{ema_codebook_quantise.1} parent=31 // pred_fallthru
        _
    $region32: #{ema_codebook_quantise.1} parent=5 // pred_fallthru
      _
    %p841 = scmp.le.s32.totalorder 2, %s12
    // Predicated region
    $region45: #{ema_codebook_quantise.1} parent=5 // pred_check
      %p842 = pneg %p841
    $region46: #{ema_codebook_quantise.1} parent=5 // pred_check_branch
      %844 = sbr.rel (%p842) target = $region48
    $region47: #{ema_codebook_quantise.1} parent=5 // pred_region
      %s845 = ssub.s32 %s12, 2
      // Predicated region
      $region49: #{ema_codebook_quantise.1} parent=47 // pred_check
        %p846 = pneg %p125
      $region50: #{ema_codebook_quantise.1} parent=47 // pred_check_branch
        %848 = sbr.rel (%p846) target = $region52
      $region51: #{ema_codebook_quantise.1} parent=47 // pred_region
        %p849 = scmp.lt.s32.totalorder %s23, 1
        %s850 = scalar_select %p849, %s23, 1
        %p851 = scmp.lt.s32.totalorder %s24, 0
        %s852 = scalar_select %p851, %s24, 0
        %s853 = smul.addr %s850, 8
        %s854 = sadd.s32 %s852, %s853
        %s855 = smul.addr %s854, 8
        %s856 = scalar_lea.vmem %s3, %s855
      $region52: #{ema_codebook_quantise.1} parent=47 // pred_fallthru
        _
      // Predicated region
      $region53: #{ema_codebook_quantise.1} parent=47 // pred_check
        %p857 = pneg %p153
      $region54: #{ema_codebook_quantise.1} parent=47 // pred_check_branch
        %859 = sbr.rel (%p857) target = $region56
      $region55: #{ema_codebook_quantise.1} parent=47 // pred_region
        %p860 = scmp.lt.s32.totalorder %s23, 1
        %s861 = scalar_select %p860, %s23, 1
        %p862 = scmp.lt.s32.totalorder %s24, 0
        %s863 = scalar_select %p862, %s24, 0
        %s864 = smul.addr %s861, 4
        %s865 = sadd.s32 %s863, %s864
        %s866 = smul.addr %s865, 8
        %s867 = scalar_lea.vmem %s4, %s866
      $region56: #{ema_codebook_quantise.1} parent=47 // pred_fallthru
        _
      // Predicated region
      $region57: #{ema_codebook_quantise.1} parent=47 // pred_check
        %p868 = pneg %p181
      $region58: #{ema_codebook_quantise.1} parent=47 // pred_check_branch
        %870 = sbr.rel (%p868) target = $region60
      $region59: #{ema_codebook_quantise.1} parent=47 // pred_region
        %p871 = scmp.lt.s32.totalorder %s23, 1
        %s872 = scalar_select %p871, %s23, 1
        %p873 = scmp.lt.s32.totalorder %s24, 0
        %s874 = scalar_select %p873, %s24, 0
        %s875 = smul.addr %s874, 8
        %s876 = smul.addr %s872, 8
        %s877 = sadd.s32 %s875, %s876
        %s878 = smul.addr %s877, 8
        %s879 = scalar_lea.vmem %s5, %s878
      $region60: #{ema_codebook_quantise.1} parent=47 // pred_fallthru
        _
    $region48: #{ema_codebook_quantise.1} parent=5 // pred_fallthru
      _
  $region6: #{ema_codebook_quantise.1} parent=0 // loop_footer
    %s16 = sadd.s32 1, %s12
  $region7: #{ema_codebook_quantise.1} parent=0 // loop_footer_branch
    %11 = sbr.rel target = $region3
  $region8: #{ema_codebook_quantise.1} parent=0 // loop_exit
    _

</llo_original>
